<compile_context>
chip_gen: v7x
topology: tpu7x:2x2x1
jax: 0.10.0
libtpu: 0.0.40
codegen_flags: <defaults>
</compile_context>

<pallas_src>
import functools

import jax
import jax.numpy as jnp
from jax.experimental import pallas as pl
from jax.experimental.pallas import tpu as pltpu

LN_EPS = 1e-5
_INV_SQRT2 = 0.7071067811865476
_SQRT_2_OVER_PI = 0.7978845608028654


def _round_up(a, b):
    return (a + b - 1) // b * b


def _cdiv(a, b):
    return (a + b - 1) // b


def _nbytes(a):
    return int(a.size) * jnp.dtype(a.dtype).itemsize


def _vmem_capacity_bytes():
    """Physical VMEM per TensorCore (128 MiB on v5e/v6e, 64 MiB on v7x)."""
    try:
        return int(pltpu.get_tpu_info().vmem_capacity_bytes)
    except Exception:
        return 64 << 20  # conservative default if the query is unavailable


def _is_multi_tensorcore_chip():
    """True on chips with >1 TensorCore per chip (v7x)."""
    try:
        kind = jax.devices()[0].device_kind.lower()
        if "v7" in kind:
            return True
    except Exception:
        pass
    return _vmem_capacity_bytes() <= (64 << 20)


_BUFFERED1_SUPPORTED = None


def _buffered_one_supported():
    """Explicitly probe (once) whether pipeline_mode=pl.Buffered(1) lowers and runs."""
    global _BUFFERED1_SUPPORTED
    if _BUFFERED1_SUPPORTED is not None:
        return _BUFFERED1_SUPPORTED
    if not hasattr(pl, "Buffered"):
        _BUFFERED1_SUPPORTED = False
        return False

    def _probe(c_ref, x_ref, o_ref):
        o_ref[...] = x_ref[...] + c_ref[...]

    try:
        c = jnp.zeros((8, 128), jnp.float32)
        x = jnp.ones((16, 128), jnp.float32)
        out = pl.pallas_call(
            _probe,
            out_shape=jax.ShapeDtypeStruct((16, 128), jnp.float32),
            grid=(2,),
            in_specs=[
                pl.BlockSpec((8, 128), lambda i: (0, 0),
                             pipeline_mode=pl.Buffered(1)),   # constant, 1-buffered
                pl.BlockSpec((8, 128), lambda i: (i, 0)),
            ],
            out_specs=pl.BlockSpec((8, 128), lambda i: (i, 0)),
        )(c, x)
        out = jax.block_until_ready(out)
        _BUFFERED1_SUPPORTED = bool(jnp.all(out == 1.0))   # verify it actually works
    except Exception:
        _BUFFERED1_SUPPORTED = False
    return _BUFFERED1_SUPPORTED


def mlp_proj_kernel(x_ref, w1_ref, b1_ref, w2_ref, b2_ref, g_ref, beta_ref, o_ref,
                    *, approximate_gelu):
    # x: (tm, D_clip)   w1: (D_clip, D_clip)   w2: (D_clip, D_cross)
    w1 = w1_ref[...]
    w2 = w2_ref[...]
    x = x_ref[...]
    if x.dtype != w1.dtype:
        # Per-tile narrow cast: avoids a separate full-array HBM pass in the wrapper.
        x = x.astype(w1.dtype)

    # Linear 1 on the MXU in the stored (narrow) dtype, f32 accumulation.
    h = jnp.dot(x, w1, preferred_element_type=jnp.float32)
    h = h + b1_ref[...].astype(jnp.float32)

    if approximate_gelu:
        # tanh-approximate GELU: transcendental runs on the EUP slot.
        h = 0.5 * h * (1.0 + jnp.tanh(_SQRT_2_OVER_PI * (h + 0.044715 * h * h * h)))
    else:
        # Exact (erf-based) GELU -- matches torch.nn.GELU() default semantics.
        h = 0.5 * h * (1.0 + jax.lax.erf(h * _INV_SQRT2))

    # Linear 2: feed the MXU in the weight dtype (narrow hidden also halves the
    # largest in-kernel temporary), keep f32 accumulation.
    y = jnp.dot(h.astype(w2.dtype), w2, preferred_element_type=jnp.float32)
    y = y + b2_ref[...].astype(jnp.float32)

    # LayerNorm over the last dim, two-pass statistics in f32.
    mean = jnp.mean(y, axis=-1, keepdims=True)
    d = y - mean
    var = jnp.mean(d * d, axis=-1, keepdims=True)
    y = d * jax.lax.rsqrt(var + LN_EPS)
    out = y * g_ref[...].astype(jnp.float32) + beta_ref[...].astype(jnp.float32)

    o_ref[...] = out.astype(o_ref.dtype)


def mlp_proj_model(image_embeds, params, *, tm=None, matmul_dtype=jnp.bfloat16,
                   approximate_gelu=False):
    """image_embeds: [B, S, clip_dim] -> [B, S, cross_dim]."""
    w1, b1, w2, b2, gamma, beta = (
        params["w1"], params["b1"], params["w2"], params["b2"],
        params["ln_gamma"], params["ln_beta"],
    )
    B, S, D_clip = image_embeds.shape
    D_cross = w2.shape[1]
    out_dtype = image_embeds.dtype
    M = B * S
    x2d = image_embeds.reshape(M, D_clip)

    # Narrow the matmul weights once (native MXU path; halves weight HBM + VMEM).
    if matmul_dtype is not None and jnp.dtype(w1.dtype) != jnp.dtype(matmul_dtype):
        w1 = w1.astype(matmul_dtype)
        w2 = w2.astype(matmul_dtype)

    b1_2d = b1.reshape(1, D_clip)
    b2_2d = b2.reshape(1, D_cross)
    g_2d = gamma.reshape(1, D_cross)
    beta_2d = beta.reshape(1, D_cross)

    x_bytes = jnp.dtype(x2d.dtype).itemsize
    w_bytes = jnp.dtype(w1.dtype).itemsize
    out_bytes = jnp.dtype(out_dtype).itemsize
    weight_bytes = sum(_nbytes(a) for a in (w1, w2, b1_2d, b2_2d, g_2d, beta_2d))

    buffered_ok = _buffered_one_supported()
    wbuf = 1 if buffered_ok else 2

    vmem_cap = _vmem_capacity_bytes()
    multi_core = _is_multi_tensorcore_chip()
    budget = max(vmem_cap - (12 << 20), 24 << 20)

    def vmem_needed(rows):
        io = 2 * rows * (D_clip * x_bytes + D_cross * out_bytes)   # double-buffered tiles
        scratch = 4 * rows * (D_clip + D_cross)                    # f32 h / y temporaries
        scratch += rows * D_clip * w_bytes                         # narrow x / h copies
        return wbuf * weight_bytes + io + scratch

    if tm is None:
        # Full-height MXU tiles; fewer grid steps on single-TC chips, 256 on v7x so
        # the 2 TensorCores split the ("parallel") row axis.
        tm = 256 if multi_core else 512
    tm = max(16, _round_up(int(tm), 16))
    tm = min(tm, _round_up(M, 16))
    while tm > 128 and vmem_needed(tm) > budget:
        tm //= 2

    grid = (_cdiv(M, tm),)   # ragged final tile is masked on store -- no jnp.pad pass

    vmem_limit = int(min(max(vmem_needed(tm) + (4 << 20), 32 << 20),
                         vmem_cap - (4 << 20)))

    cost = pl.CostEstimate(
        flops=2 * M * D_clip * (D_clip + D_cross) + 10 * M * D_cross,
        transcendentals=M * D_clip,
        bytes_accessed=_nbytes(x2d) + weight_bytes + M * D_cross * out_bytes,
    )

    def const_spec(shape):
        if buffered_ok:
            return pl.BlockSpec(shape, lambda i: (0, 0), pipeline_mode=pl.Buffered(1))
        return pl.BlockSpec(shape, lambda i: (0, 0))

    kernel = functools.partial(mlp_proj_kernel, approximate_gelu=approximate_gelu)

    out2d = pl.pallas_call(
        kernel,
        out_shape=jax.ShapeDtypeStruct((M, D_cross), out_dtype),
        grid_spec=pltpu.PrefetchScalarGridSpec(
            num_scalar_prefetch=0,
            grid=grid,
            in_specs=[
                pl.BlockSpec((tm, D_clip), lambda i: (i, 0)),   # x row tile
                const_spec((D_clip, D_clip)),                   # w1 (resident)
                const_spec((1, D_clip)),                        # b1
                const_spec((D_clip, D_cross)),                  # w2 (resident)
                const_spec((1, D_cross)),                       # b2
                const_spec((1, D_cross)),                       # ln gamma
                const_spec((1, D_cross)),                       # ln beta
            ],
            out_specs=pl.BlockSpec((tm, D_cross), lambda i: (i, 0)),
        ),
        compiler_params=pltpu.CompilerParams(
            dimension_semantics=("parallel",),
            vmem_limit_bytes=vmem_limit,
        ),
        cost_estimate=cost,
    )(x2d, w1, b1_2d, w2, b2_2d, g_2d, beta_2d)

    return out2d.reshape(B, S, D_cross)


def init_params(key, clip_embeddings_dim, cross_attention_dim, dtype=jnp.float32):
    k1, k2, k3, k4 = jax.random.split(key, 4)
    # Weights stored as [in, out] (torch Linear weight transposed).
    w1 = jax.random.normal(k1, (clip_embeddings_dim, clip_embeddings_dim), dtype) * 0.02
    b1 = jax.random.normal(k2, (clip_embeddings_dim,), dtype) * 0.02
    w2 = jax.random.normal(k3, (clip_embeddings_dim, cross_attention_dim), dtype) * 0.02
    b2 = jax.random.normal(k4, (cross_attention_dim,), dtype) * 0.02
    ln_gamma = jnp.ones((cross_attention_dim,), dtype)
    ln_beta = jnp.zeros((cross_attention_dim,), dtype)
    return dict(w1=w1, b1=b1, w2=w2, b2=b2, ln_gamma=ln_gamma, ln_beta=ln_beta)


def reference(image_embeds, params):
    """Pure-JAX f32 reference of the same forward pass (torch semantics)."""
    x = image_embeds.astype(jnp.float32)
    h = x @ params["w1"].astype(jnp.float32) + params["b1"].astype(jnp.float32)
    h = 0.5 * h * (1.0 + jax.lax.erf(h * _INV_SQRT2))
    y = h @ params["w2"].astype(jnp.float32) + params["b2"].astype(jnp.float32)
    mean = jnp.mean(y, axis=-1, keepdims=True)
    var = jnp.mean((y - mean) ** 2, axis=-1, keepdims=True)
    y = (y - mean) * jax.lax.rsqrt(var + LN_EPS)
    return (y * params["ln_gamma"] + params["ln_beta"]).astype(image_embeds.dtype)


if __name__ == "__main__":
    # Small shapes consistent with the module's forward: [batch, seq, clip_dim].
    batch, seq = 2, 8
    clip_embeddings_dim = 256
    cross_attention_dim = 128

    key = jax.random.PRNGKey(0)
    k_x, k_p = jax.random.split(key)
    image_embeds = jax.random.normal(k_x, (batch, seq, clip_embeddings_dim), jnp.float32)
    params = init_params(k_p, clip_embeddings_dim, cross_attention_dim)

    ref = reference(image_embeds, params)

    # Exact-precision path (f32 matmuls): tight check against the f32 reference.
    out_f32 = jax.block_until_ready(
        mlp_proj_model(image_embeds, params, matmul_dtype=jnp.float32))
    assert out_f32.shape == (batch, seq, cross_attention_dim)
    assert jnp.allclose(out_f32, ref, atol=1e-4, rtol=1e-4), \
        float(jnp.max(jnp.abs(out_f32 - ref)))

    # Default fast path (bf16 MXU feed, f32 accumulation): looser tolerance vs f32 ref.
    out_bf16 = jax.block_until_ready(mlp_proj_model(image_embeds, params))
    assert out_bf16.shape == (batch, seq, cross_attention_dim)
    assert jnp.allclose(out_bf16, ref, atol=5e-2, rtol=5e-2), \
        float(jnp.max(jnp.abs(out_bf16 - ref)))

    print("KERNEL_OK")
</pallas_src>

<mosaic_0001>
module attributes {stable_mosaic.version = 11 : i64} {
  func.func @_probe(%arg0: i32, %arg1: memref<8x128xf32, #tpu.memory_space<vmem>>, %arg2: memref<8x128xf32, #tpu.memory_space<vmem>>, %arg3: memref<8x128xf32, #tpu.memory_space<vmem>>) attributes {dimension_semantics = [#tpu.dimension_semantics<arbitrary>], iteration_bounds = array<i64: 2>, scalar_prefetch = 0 : i64, scratch_operands = 0 : i64, tpu.core_type = #tpu.core_type<tc>, window_params = [{pipeline_mode = #tpu.pipeline_mode<synchronous>, transform_indices = @transform_0, window_bounds = array<i64: 8, 128>}, {transform_indices = @transform_1, window_bounds = array<i64: 8, 128>}, {transform_indices = @transform_2, window_bounds = array<i64: 8, 128>}]} {
    %c0 = arith.constant 0 : index
    %c0_0 = arith.constant 0 : index
    %0 = vector.load %arg2[%c0, %c0_0] : memref<8x128xf32, #tpu.memory_space<vmem>>, vector<8x128xf32>
    %c0_1 = arith.constant 0 : index
    %c0_2 = arith.constant 0 : index
    %1 = vector.load %arg1[%c0_1, %c0_2] : memref<8x128xf32, #tpu.memory_space<vmem>>, vector<8x128xf32>
    %2 = arith.addf %0, %1 : vector<8x128xf32>
    %c0_3 = arith.constant 0 : index
    %c0_4 = arith.constant 0 : index
    %3 = vector.load %arg3[%c0_3, %c0_4] : memref<8x128xf32, #tpu.memory_space<vmem>>, vector<8x128xf32>
    tpu.vector_store %arg3[%c0_3, %c0_4], %2 {strides = array<i32>} : memref<8x128xf32, #tpu.memory_space<vmem>>, vector<8x128xf32>,
    return
  }
  func.func @transform_0(%arg0: i32) -> (i32, i32) {
    %c0_i32 = arith.constant 0 : i32
    %c0_i32_0 = arith.constant 0 : i32
    %c0_i32_1 = arith.constant 0 : i32
    return %c0_i32, %c0_i32_0 : i32, i32
  }
  func.func @transform_1(%arg0: i32) -> (i32, i32) {
    %c0_i32 = arith.constant 0 : i32
    %c0_i32_0 = arith.constant 0 : i32
    return %arg0, %c0_i32 : i32, i32
  }
  func.func @transform_2(%arg0: i32) -> (i32, i32) {
    %c0_i32 = arith.constant 0 : i32
    %c0_i32_0 = arith.constant 0 : i32
    return %arg0, %c0_i32 : i32, i32
  }
}

module attributes {stable_mosaic.version = 11 : i64} {
  func.func @mlp_proj_kernel(%arg0: i32, %arg1: memref<16x256xf32, #tpu.memory_space<vmem>>, %arg2: memref<256x256xf32, #tpu.memory_space<vmem>>, %arg3: memref<1x256xf32, #tpu.memory_space<vmem>>, %arg4: memref<256x128xf32, #tpu.memory_space<vmem>>, %arg5: memref<1x128xf32, #tpu.memory_space<vmem>>, %arg6: memref<1x128xf32, #tpu.memory_space<vmem>>, %arg7: memref<1x128xf32, #tpu.memory_space<vmem>>, %arg8: memref<16x128xf32, #tpu.memory_space<vmem>>) attributes {dimension_semantics = [#tpu.dimension_semantics<parallel>], iteration_bounds = array<i64: 1>, scalar_prefetch = 0 : i64, scratch_operands = 0 : i64, tpu.core_type = #tpu.core_type<tc>, window_params = [{transform_indices = @transform_0, window_bounds = array<i64: 16, 256>}, {pipeline_mode = #tpu.pipeline_mode<synchronous>, transform_indices = @transform_1, window_bounds = array<i64: 256, 256>}, {pipeline_mode = #tpu.pipeline_mode<synchronous>, transform_indices = @transform_2, window_bounds = array<i64: 1, 256>}, {pipeline_mode = #tpu.pipeline_mode<synchronous>, transform_indices = @transform_3, window_bounds = array<i64: 256, 128>}, {pipeline_mode = #tpu.pipeline_mode<synchronous>, transform_indices = @transform_4, window_bounds = array<i64: 1, 128>}, {pipeline_mode = #tpu.pipeline_mode<synchronous>, transform_indices = @transform_5, window_bounds = array<i64: 1, 128>}, {pipeline_mode = #tpu.pipeline_mode<synchronous>, transform_indices = @transform_6, window_bounds = array<i64: 1, 128>}, {transform_indices = @transform_7, window_bounds = array<i64: 16, 128>}]} {
    %c0 = arith.constant 0 : index
    %c0_0 = arith.constant 0 : index
    %0 = vector.load %arg2[%c0, %c0_0] : memref<256x256xf32, #tpu.memory_space<vmem>>, vector<256x256xf32>
    %c0_1 = arith.constant 0 : index
    %c0_2 = arith.constant 0 : index
    %1 = vector.load %arg4[%c0_1, %c0_2] : memref<256x128xf32, #tpu.memory_space<vmem>>, vector<256x128xf32>
    %c0_3 = arith.constant 0 : index
    %c0_4 = arith.constant 0 : index
    %2 = vector.load %arg1[%c0_3, %c0_4] : memref<16x256xf32, #tpu.memory_space<vmem>>, vector<16x256xf32>
    %cst = arith.constant dense<0.000000e+00> : vector<16x256xf32>
    %3 = tpu.matmul %2, %0, %cst {dimension_numbers = #tpu.dot_dimension_numbers<[1], [0], [0], [1], [0, 0, 1, 1], [], []>} : vector<16x256xf32>, vector<256x256xf32>, vector<16x256xf32> -> vector<16x256xf32>
    %c0_5 = arith.constant 0 : index
    %c0_6 = arith.constant 0 : index
    %4 = vector.load %arg3[%c0_5, %c0_6] : memref<1x256xf32, #tpu.memory_space<vmem>>, vector<1x256xf32>
    %5 = vector.broadcast %4 : vector<1x256xf32> to vector<16x256xf32>
    %6 = arith.addf %3, %5 : vector<16x256xf32>
    %cst_7 = arith.constant 5.000000e-01 : f32
    %7 = vector.broadcast %cst_7 : f32 to vector<16x256xf32>
    %8 = arith.mulf %7, %6 : vector<16x256xf32>
    %cst_8 = arith.constant 0.707106769 : f32
    %9 = vector.broadcast %cst_8 : f32 to vector<16x256xf32>
    %10 = arith.mulf %6, %9 : vector<16x256xf32>
    %11 = math.erf %10 : vector<16x256xf32>
    %cst_9 = arith.constant 1.000000e+00 : f32
    %12 = vector.broadcast %cst_9 : f32 to vector<16x256xf32>
    %13 = arith.addf %12, %11 : vector<16x256xf32>
    %14 = arith.mulf %8, %13 : vector<16x256xf32>
    %cst_10 = arith.constant dense<0.000000e+00> : vector<16x128xf32>
    %15 = tpu.matmul %14, %1, %cst_10 {dimension_numbers = #tpu.dot_dimension_numbers<[1], [0], [0], [1], [0, 0, 1, 1], [], []>} : vector<16x256xf32>, vector<256x128xf32>, vector<16x128xf32> -> vector<16x128xf32>
    %c0_11 = arith.constant 0 : index
    %c0_12 = arith.constant 0 : index
    %16 = vector.load %arg5[%c0_11, %c0_12] : memref<1x128xf32, #tpu.memory_space<vmem>>, vector<1x128xf32>
    %17 = vector.broadcast %16 : vector<1x128xf32> to vector<16x128xf32>
    %18 = arith.addf %15, %17 : vector<16x128xf32>
    %cst_13 = arith.constant dense<0.000000e+00> : vector<16xf32>
    %19 = vector.multi_reduction <add>, %18, %cst_13 [1] : vector<16x128xf32> to vector<16xf32>
    %20 = vector.shape_cast %19 : vector<16xf32> to vector<16x1xf32>
    %cst_14 = arith.constant 1.280000e+02 : f32
    %21 = vector.broadcast %cst_14 : f32 to vector<16x1xf32>
    %22 = arith.divf %20, %21 : vector<16x1xf32>
    %23 = vector.broadcast %22 : vector<16x1xf32> to vector<16x128xf32>
    %24 = arith.subf %18, %23 : vector<16x128xf32>
    %25 = arith.mulf %24, %24 : vector<16x128xf32>
    %cst_15 = arith.constant dense<0.000000e+00> : vector<16xf32>
    %26 = vector.multi_reduction <add>, %25, %cst_15 [1] : vector<16x128xf32> to vector<16xf32>
    %27 = vector.shape_cast %26 : vector<16xf32> to vector<16x1xf32>
    %cst_16 = arith.constant 1.280000e+02 : f32
    %28 = vector.broadcast %cst_16 : f32 to vector<16x1xf32>
    %29 = arith.divf %27, %28 : vector<16x1xf32>
    %cst_17 = arith.constant 9.99999974E-6 : f32
    %30 = vector.broadcast %cst_17 : f32 to vector<16x1xf32>
    %31 = arith.addf %29, %30 : vector<16x1xf32>
    %32 = math.rsqrt %31 : vector<16x1xf32>
    %33 = vector.broadcast %32 : vector<16x1xf32> to vector<16x128xf32>
    %34 = arith.mulf %24, %33 : vector<16x128xf32>
    %c0_18 = arith.constant 0 : index
    %c0_19 = arith.constant 0 : index
    %35 = vector.load %arg6[%c0_18, %c0_19] : memref<1x128xf32, #tpu.memory_space<vmem>>, vector<1x128xf32>
    %36 = vector.broadcast %35 : vector<1x128xf32> to vector<16x128xf32>
    %37 = arith.mulf %34, %36 : vector<16x128xf32>
    %c0_20 = arith.constant 0 : index
    %c0_21 = arith.constant 0 : index
    %38 = vector.load %arg7[%c0_20, %c0_21] : memref<1x128xf32, #tpu.memory_space<vmem>>, vector<1x128xf32>
    %39 = vector.broadcast %38 : vector<1x128xf32> to vector<16x128xf32>
    %40 = arith.addf %37, %39 : vector<16x128xf32>
    %c0_22 = arith.constant 0 : index
    %c0_23 = arith.constant 0 : index
    %41 = vector.load %arg8[%c0_22, %c0_23] : memref<16x128xf32, #tpu.memory_space<vmem>>, vector<16x128xf32>
    tpu.vector_store %arg8[%c0_22, %c0_23], %40 {strides = array<i32>} : memref<16x128xf32, #tpu.memory_space<vmem>>, vector<16x128xf32>,
    return
  }
  func.func @transform_0(%arg0: i32) -> (i32, i32) {
    %c0_i32 = arith.constant 0 : i32
    %c0_i32_0 = arith.constant 0 : i32
    return %arg0, %c0_i32 : i32, i32
  }
  func.func @transform_1(%arg0: i32) -> (i32, i32) {
    %c0_i32 = arith.constant 0 : i32
    %c0_i32_0 = arith.constant 0 : i32
    %c0_i32_1 = arith.constant 0 : i32
    return %c0_i32, %c0_i32_0 : i32, i32
  }
  func.func @transform_2(%arg0: i32) -> (i32, i32) {
    %c0_i32 = arith.constant 0 : i32
    %c0_i32_0 = arith.constant 0 : i32
    %c0_i32_1 = arith.constant 0 : i32
    return %c0_i32, %c0_i32_0 : i32, i32
  }
  func.func @transform_3(%arg0: i32) -> (i32, i32) {
    %c0_i32 = arith.constant 0 : i32
    %c0_i32_0 = arith.constant 0 : i32
    %c0_i32_1 = arith.constant 0 : i32
    return %c0_i32, %c0_i32_0 : i32, i32
  }
  func.func @transform_4(%arg0: i32) -> (i32, i32) {
    %c0_i32 = arith.constant 0 : i32
    %c0_i32_0 = arith.constant 0 : i32
    %c0_i32_1 = arith.constant 0 : i32
    return %c0_i32, %c0_i32_0 : i32, i32
  }
  func.func @transform_5(%arg0: i32) -> (i32, i32) {
    %c0_i32 = arith.constant 0 : i32
    %c0_i32_0 = arith.constant 0 : i32
    %c0_i32_1 = arith.constant 0 : i32
    return %c0_i32, %c0_i32_0 : i32, i32
  }
  func.func @transform_6(%arg0: i32) -> (i32, i32) {
    %c0_i32 = arith.constant 0 : i32
    %c0_i32_0 = arith.constant 0 : i32
    %c0_i32_1 = arith.constant 0 : i32
    return %c0_i32, %c0_i32_0 : i32, i32
  }
  func.func @transform_7(%arg0: i32) -> (i32, i32) {
    %c0_i32 = arith.constant 0 : i32
    %c0_i32_0 = arith.constant 0 : i32
    return %arg0, %c0_i32 : i32, i32
  }
}

</mosaic_0001>

<llo_original>
// kernel: tpu_custom_call.1
$region0: #{tpu_custom_call.1}
  #allocation0 [shape = 'u32[]', space=smem, size = 0x4, offset = 0x4, fixed_abs, tag = 'smem constant byte address 0x4 - core index']
  #allocation1 [shape = 'u32[144,128]{1,0:T(1,128)}', space=vmem, size = 0x12000, scoped, tag = 'internal scratch']
  %s0 = inlined_call_operand.hbm [shape: f32[8,128], index: 0, kind: input, shape index: {}]
  %s1 = inlined_call_operand.hbm [shape: f32[16,128], index: 1, kind: input, shape index: {}]
  %s2 = inlined_call_operand.hbm [shape: f32[16,128], index: 2, kind: output, shape index: {}]
  %s3 = sld [smem:[#allocation0]]
  $region49: #{tpu_custom_call.1} parent=0
    _
  %s5 = ssub.s32 1, %s3
  %s6 = scalar_select 0, %s5, %s3
  $region1: #{tpu_custom_call.1} parent=0
    #allocation2 [shape = 'u8[4096]{0}', space=vmem, size = 0x1000, scoped, tag = 'input window, operand 0, single buffered']
    #allocation3 [shape = 's32[2]{0}', space=sflag, size = 0x8, scoped, tag = 'scoped memory for tpu_custom_call.1']
    #allocation4 [shape = 's32[2]{0}', space=sflag, size = 0x8, scoped, tag = 'scoped memory for tpu_custom_call.1']
    #allocation5 [shape = 'u8[8192]{0}', space=vmem, size = 0x2000, scoped, tag = 'input window, operand 1']
    #allocation6 [shape = 's32[2]{0}', space=sflag, size = 0x8, scoped, tag = 'scoped memory for tpu_custom_call.1']
    #allocation7 [shape = 'u8[8192]{0}', space=vmem, size = 0x2000, scoped, tag = 'output window, operand 0']
    %7 = vsyncpa [#allocation3], 0
    %8 = vsyncpa [#allocation6], 0
    %s9 = scalar_lea.sflag [#allocation6], 1
    %10 = vsyncpa %s9, 0
    %11 = vsyncpa [#allocation4], 0
    %s12 = scalar_lea.sflag [#allocation4], 1
    %13 = vsyncpa %s12, 0
    loop: start=0, step=1, limit=4
    $region2: #{tpu_custom_call.1} parent=1 // loop_pre_header
      _
    $region3: #{tpu_custom_call.1} parent=1 // loop_header
      %s15 = sphi 0, %s19
      %p16 = scmp.ge.s32.totalorder %s15, 4
      %s23 = sphi 0, %s23
      %s25 = sphi 0, %s23
      %s26 = sphi 0, %s25
      %s40 = sphi 0, %s26
      %s46 = sphi 0, %s48
      %s49 = sphi 0, %s46
      %s50 = sphi 0, %s49
      %s66 = sphi 0, %s50
      %s72 = sphi 0, %s74
      %s75 = sphi 0, %s72
      %s76 = sphi 0, %s75
      %s92 = sphi 0, %s76
    $region4: #{tpu_custom_call.1} parent=1 // loop_header_branch
      %18 = sbr.rel (%p16) target = $region8
    $region5: #{tpu_custom_call.1} parent=1 // loop_body
      %s20 = ssub.s32 %s15, 1
      %s21 = ssub.s32 %s15, 2
      %s22 = sadd.s32 %s15, 1
      %s24 = sadd.s32 %s23, 1
      %p27 = scmp.eq.s32.totalorder %s15, 1
      %p28 = scmp.ne.s32.totalorder %s23, %s25
      %p29 = scmp.eq.s32.totalorder %s15, 0
      %p30 = por %p28, %p29
      %p31 = scmp.ne.s32.totalorder %s23, %s25
      %p32 = scmp.eq.s32.totalorder %s20, 1
      %p33 = por %p31, %p32
      %p34 = scmp.ne.s32.totalorder %s25, %s26
      %p35 = scmp.eq.s32.totalorder %s20, 0
      %p36 = por %p34, %p35
      %p37 = scmp.ne.s32.totalorder %s25, %s26
      %p38 = scmp.eq.s32.totalorder %s21, 1
      %p39 = por %p37, %p38
      %p41 = scmp.ne.s32.totalorder %s26, %s40
      %p42 = scmp.eq.s32.totalorder %s21, 0
      %p43 = por %p41, %p42
      %s44 = ssub.s32 %s15, %s22
      %p45 = scmp.eq.s32.totalorder %s44, 0
      %s47 = sadd.s32 %s46, 1
      %s48 = scalar_select %p45, %s46, %s47
      %p51 = pneg %p45
      %p52 = scmp.eq.s32.totalorder %s15, 1
      %p53 = por %p51, %p52
      %p54 = scmp.ne.s32.totalorder %s46, %s49
      %p55 = scmp.eq.s32.totalorder %s15, 0
      %p56 = por %p54, %p55
      %p57 = scmp.ne.s32.totalorder %s46, %s49
      %p58 = scmp.eq.s32.totalorder %s20, 1
      %p59 = por %p57, %p58
      %p60 = scmp.ne.s32.totalorder %s49, %s50
      %p61 = scmp.eq.s32.totalorder %s20, 0
      %p62 = por %p60, %p61
      %p63 = scmp.ne.s32.totalorder %s49, %s50
      %p64 = scmp.eq.s32.totalorder %s21, 1
      %p65 = por %p63, %p64
      %p67 = scmp.ne.s32.totalorder %s50, %s66
      %p68 = scmp.eq.s32.totalorder %s21, 0
      %p69 = por %p67, %p68
      %s70 = ssub.s32 %s15, %s22
      %p71 = scmp.eq.s32.totalorder %s70, 0
      %s73 = sadd.s32 %s72, 1
      %s74 = scalar_select %p71, %s72, %s73
      %p77 = pneg %p71
      %p78 = scmp.eq.s32.totalorder %s15, 1
      %p79 = por %p77, %p78
      %p80 = scmp.ne.s32.totalorder %s72, %s75
      %p81 = scmp.eq.s32.totalorder %s15, 0
      %p82 = por %p80, %p81
      %p83 = scmp.ne.s32.totalorder %s72, %s75
      %p84 = scmp.eq.s32.totalorder %s20, 1
      %p85 = por %p83, %p84
      %p86 = scmp.ne.s32.totalorder %s75, %s76
      %p87 = scmp.eq.s32.totalorder %s20, 0
      %p88 = por %p86, %p87
      %p89 = scmp.ne.s32.totalorder %s75, %s76
      %p90 = scmp.eq.s32.totalorder %s21, 1
      %p91 = por %p89, %p90
      %p93 = scmp.ne.s32.totalorder %s76, %s92
      %p94 = scmp.eq.s32.totalorder %s21, 0
      %p95 = por %p93, %p94
      %p96 = scmp.le.s32.totalorder 1, %s15
      %p97 = scmp.lt.s32.totalorder %s15, 3
      %p98 = pnand %p96, %p97
      %p99 = pneg %p98
      // Predicated region
      $region9: #{tpu_custom_call.1} parent=5 // pred_check
        _
      $region10: #{tpu_custom_call.1} parent=5 // pred_check_branch
        %101 = sbr.rel (%p98) target = $region12
      $region11: #{tpu_custom_call.1} parent=5 // pred_region
        %s102 = ssub.s32 %s15, 1
        // Predicated region
        $region13: #{tpu_custom_call.1} parent=11 // pred_check
          %p103 = pneg %p36
        $region14: #{tpu_custom_call.1} parent=11 // pred_check_branch
          %105 = sbr.rel (%p103) target = $region16
        $region15: #{tpu_custom_call.1} parent=11 // pred_region
          %s107 = ssub.s32 128, 128
          %108 = vsyncadd [#allocation3], %s107
          %s110 = sshll.u32 [#allocation2], 4
          %s111 = int_to_ptr.vmem [resolvable:$true] %s110
          %113 = dma.hbm_to_vmem [thread:$0]  %s0, 128, %s111, [#allocation3]
        $region16: #{tpu_custom_call.1} parent=11 // pred_fallthru
          _
      $region12: #{tpu_custom_call.1} parent=5 // pred_fallthru
        _
      %p114 = scmp.lt.s32.totalorder %s15, 2
      // Predicated region
      $region17: #{tpu_custom_call.1} parent=5 // pred_check
        %p115 = pneg %p114
      $region18: #{tpu_custom_call.1} parent=5 // pred_check_branch
        %117 = sbr.rel (%p115) target = $region20
      $region19: #{tpu_custom_call.1} parent=5 // pred_region
        // Predicated region
        $region21: #{tpu_custom_call.1} parent=19 // pred_check
          %p118 = pneg %p56
        $region22: #{tpu_custom_call.1} parent=19 // pred_check_branch
          %120 = sbr.rel (%p118) target = $region24
        $region23: #{tpu_custom_call.1} parent=19 // pred_region
          %s121 = sand.u32 %s46, 1
          %s122 = scalar_lea.sflag [#allocation6], %s121
          %s123 = sand.u32 %s46, 1
          %s124 = smul.addr %s123, 8
          %s125 = scalar_lea.vmem [#allocation5], %s124
          %s127 = ssub.s32 128, 128
          %128 = vsyncadd %s122, %s127
          %s129 = smul.addr %s15, 128
          %s130 = scalar_lea.hbm %s1, %s129
          %s132 = sshll.u32 %s125, 4
          %s133 = int_to_ptr.vmem [resolvable:$true] %s132
          %135 = dma.hbm_to_vmem [thread:$0]  %s130, 128, %s133, %s122
        $region24: #{tpu_custom_call.1} parent=19 // pred_fallthru
          _
      $region20: #{tpu_custom_call.1} parent=5 // pred_fallthru
        _
      %p136 = scmp.le.s32.totalorder 1, %s15
      %p137 = scmp.lt.s32.totalorder %s15, 3
      %p138 = pnand %p136, %p137
      %p139 = pneg %p138
      // Predicated region
      $region25: #{tpu_custom_call.1} parent=5 // pred_check
        _
      $region26: #{tpu_custom_call.1} parent=5 // pred_check_branch
        %141 = sbr.rel (%p138) target = $region28
      $region27: #{tpu_custom_call.1} parent=5 // pred_region
        %s142 = ssub.s32 %s15, 1
        // Predicated region
        $region29: #{tpu_custom_call.1} parent=27 // pred_check
          %p143 = pneg %p36
        $region30: #{tpu_custom_call.1} parent=27 // pred_check_branch
          %145 = sbr.rel (%p143) target = $region32
        $region31: #{tpu_custom_call.1} parent=27 // pred_region
          %146 = dma.done [#allocation3], 128
        $region32: #{tpu_custom_call.1} parent=27 // pred_fallthru
          _
        %s147 = sand.u32 %s49, 1
        %s148 = scalar_lea.sflag [#allocation6], %s147
        %s149 = sand.u32 %s49, 1
        %s150 = smul.addr %s149, 8
        %s151 = scalar_lea.vmem [#allocation5], %s150
        // Predicated region
        $region33: #{tpu_custom_call.1} parent=27 // pred_check
          %p152 = pneg %p62
        $region34: #{tpu_custom_call.1} parent=27 // pred_check_branch
          %154 = sbr.rel (%p152) target = $region36
        $region35: #{tpu_custom_call.1} parent=27 // pred_region
          %155 = dma.done %s148, 128
        $region36: #{tpu_custom_call.1} parent=27 // pred_fallthru
          _
        %p156 = pneg %p36
        %p157 = pneg %p33
        %s158 = sand.u32 %s49, 1
        %s159 = scalar_lea.sflag [#allocation6], %s158
        %s160 = sand.u32 %s49, 1
        %s161 = smul.addr %s160, 8
        %s162 = scalar_lea.vmem [#allocation5], %s161
        %p163 = pneg %p62
        %p164 = pneg %p59
        %p165 = pneg %p88
        %p166 = pneg %p85
        %s167 = sand.u32 %s75, 1
        %s168 = scalar_lea.sflag [#allocation4], %s167
        %s169 = sand.u32 %s75, 1
        %s170 = smul.addr %s169, 8
        %s171 = scalar_lea.vmem [#allocation7], %s170
        %v172 = vld [vmem:[%s151] sm:$0xff]
        %v173 = vld [vmem:[#allocation2] sm:$0xff]
        %v174 = vadd.f32 %v172, %v173
        %175 = vst [vmem:[%s171] sm:$0xff] %v174
        %s176 = sand.u32 %s75, 1
        %s177 = scalar_lea.sflag [#allocation4], %s176
        %s178 = sand.u32 %s75, 1
        %s179 = smul.addr %s178, 8
        %s180 = scalar_lea.vmem [#allocation7], %s179
        // Predicated region
        $region37: #{tpu_custom_call.1} parent=27 // pred_check
          %p181 = pneg %p85
        $region38: #{tpu_custom_call.1} parent=27 // pred_check_branch
          %183 = sbr.rel (%p181) target = $region40
        $region39: #{tpu_custom_call.1} parent=27 // pred_region
          %s185 = ssub.s32 128, 128
          %186 = vsyncadd %s177, %s185
          %s187 = smul.addr %s20, 128
          %s188 = scalar_lea.hbm %s2, %s187
          %s190 = sshll.u32 %s180, 4
          %s191 = int_to_ptr.vmem [resolvable:$true] %s190
          %193 = dma.vmem_to_hbm [thread:$0]  %s191, 128, %s188, %s177
        $region40: #{tpu_custom_call.1} parent=27 // pred_fallthru
          _
      $region28: #{tpu_custom_call.1} parent=5 // pred_fallthru
        _
      %p194 = scmp.le.s32.totalorder 2, %s15
      // Predicated region
      $region41: #{tpu_custom_call.1} parent=5 // pred_check
        %p195 = pneg %p194
      $region42: #{tpu_custom_call.1} parent=5 // pred_check_branch
        %197 = sbr.rel (%p195) target = $region44
      $region43: #{tpu_custom_call.1} parent=5 // pred_region
        %s198 = ssub.s32 %s15, 2
        // Predicated region
        $region45: #{tpu_custom_call.1} parent=43 // pred_check
          %p199 = pneg %p91
        $region46: #{tpu_custom_call.1} parent=43 // pred_check_branch
          %201 = sbr.rel (%p199) target = $region48
        $region47: #{tpu_custom_call.1} parent=43 // pred_region
          %s202 = sand.u32 %s76, 1
          %s203 = scalar_lea.sflag [#allocation4], %s202
          %s204 = sand.u32 %s76, 1
          %s205 = smul.addr %s204, 8
          %s206 = scalar_lea.vmem [#allocation7], %s205
          %207 = dma.done %s203, 128
        $region48: #{tpu_custom_call.1} parent=43 // pred_fallthru
          _
      $region44: #{tpu_custom_call.1} parent=5 // pred_fallthru
        _
    $region6: #{tpu_custom_call.1} parent=1 // loop_footer
      %s19 = sadd.s32 1, %s15
    $region7: #{tpu_custom_call.1} parent=1 // loop_footer_branch
      %14 = sbr.rel target = $region3
    $region8: #{tpu_custom_call.1} parent=1 // loop_exit
      _
    %208 = vsyncpa [#allocation3], 1
    %s209 = scalar_lea.sflag [#allocation3], 1
    %210 = vsyncpa %s209, 1
    %211 = vsyncpa [#allocation6], 1
    %s212 = scalar_lea.sflag [#allocation6], 1
    %213 = vsyncpa %s212, 1
    %214 = vsyncpa [#allocation4], 1
    %s215 = scalar_lea.sflag [#allocation4], 1
    %216 = vsyncpa %s215, 1

// kernel: tpu_custom_call.1
$region0: #{tpu_custom_call.1}
  #allocation0 [shape = 'u32[]', space=smem, size = 0x4, offset = 0x4, fixed_abs, tag = 'smem constant byte address 0x4 - core index']
  #allocation1 [shape = 'u32[144,128]{1,0:T(1,128)}', space=vmem, size = 0x12000, scoped, tag = 'internal scratch']
  %s0 = inlined_call_operand.hbm [shape: f32[16,256], index: 0, kind: input, shape index: {}]
  %s1 = inlined_call_operand.hbm [shape: f32[256,256], index: 1, kind: input, shape index: {}]
  %s2 = inlined_call_operand.vmem [shape: f32[1,256], index: 2, kind: input, shape index: {}]
  %s3 = inlined_call_operand.hbm [shape: f32[256,128], index: 3, kind: input, shape index: {}]
  %s4 = inlined_call_operand.vmem [shape: f32[1,128], index: 4, kind: input, shape index: {}]
  %s5 = inlined_call_operand.vmem [shape: f32[1,128], index: 5, kind: input, shape index: {}]
  %s6 = inlined_call_operand.vmem [shape: f32[1,128], index: 6, kind: input, shape index: {}]
  %s7 = inlined_call_operand.hbm [shape: f32[16,128], index: 7, kind: output, shape index: {}]
  %s8 = sld [smem:[#allocation0]]
  $region50: #{tpu_custom_call.1} parent=0
    _
  %s10 = ssub.s32 1, %s8
  %s11 = scalar_select 0, %s10, %s8
  $region1: #{tpu_custom_call.1} parent=0
    #allocation2 [shape = 'u8[16384]{0}', space=vmem, size = 0x4000, scoped, tag = 'input window, operand 0, single buffered']
    #allocation3 [shape = 's32[1]{0}', space=sflag, size = 0x4, scoped, tag = 'scoped memory for tpu_custom_call.1']
    #allocation4 [shape = 's32[1]{0}', space=sflag, size = 0x4, scoped, tag = 'scoped memory for tpu_custom_call.1']
    #allocation5 [shape = 'u8[262144]{0}', space=vmem, size = 0x40000, scoped, tag = 'input window, operand 1, single buffered']
    #allocation6 [shape = 's32[1]{0}', space=sflag, size = 0x4, scoped, tag = 'scoped memory for tpu_custom_call.1']
    #allocation7 [shape = 'u8[131072]{0}', space=vmem, size = 0x20000, scoped, tag = 'input window, operand 3, single buffered']
    #allocation8 [shape = 'u8[8192]{0}', space=vmem, size = 0x2000, scoped, tag = 'output window, operand 0, single buffered']
    %12 = vsyncpa [#allocation3], 0
    %13 = vsyncpa [#allocation6], 0
    %14 = vsyncpa [#allocation4], 0
    // Predicated region
    $region2: #{tpu_custom_call.1} parent=1 // pred_check
      _
    $region3: #{tpu_custom_call.1} parent=1 // pred_check_branch
      %16 = sbr.rel (0) target = $region5
    $region4: #{tpu_custom_call.1} parent=1 // pred_region
      %s18 = ssub.s32 512, 512
      %19 = vsyncadd [#allocation3], %s18
      %s20 = sshll.u32 [#allocation2], 4
      %s21 = int_to_ptr.vmem [resolvable:$true] %s20
      %26 = dma.hbm_to_vmem [thread:$0]  %s0, 512, %s21, [#allocation3], 256, 256, 16
    $region5: #{tpu_custom_call.1} parent=1 // pred_fallthru
      _
    // Predicated region
    $region6: #{tpu_custom_call.1} parent=1 // pred_check
      _
    $region7: #{tpu_custom_call.1} parent=1 // pred_check_branch
      %28 = sbr.rel (0) target = $region9
    $region8: #{tpu_custom_call.1} parent=1 // pred_region
      %s30 = ssub.s32 8192, 8192
      %31 = vsyncadd [#allocation6], %s30
      %s32 = sshll.u32 [#allocation5], 4
      %s33 = int_to_ptr.vmem [resolvable:$true] %s32
      %38 = dma.hbm_to_vmem [thread:$0]  %s1, 8192, %s33, [#allocation6], 256, 256, 16
    $region9: #{tpu_custom_call.1} parent=1 // pred_fallthru
      _
    // Predicated region
    $region10: #{tpu_custom_call.1} parent=1 // pred_check
      _
    $region11: #{tpu_custom_call.1} parent=1 // pred_check_branch
      %40 = sbr.rel (0) target = $region13
    $region12: #{tpu_custom_call.1} parent=1 // pred_region
      _
    $region13: #{tpu_custom_call.1} parent=1 // pred_fallthru
      _
    // Predicated region
    $region14: #{tpu_custom_call.1} parent=1 // pred_check
      _
    $region15: #{tpu_custom_call.1} parent=1 // pred_check_branch
      %42 = sbr.rel (0) target = $region17
    $region16: #{tpu_custom_call.1} parent=1 // pred_region
      %s44 = ssub.s32 4096, 4096
      %45 = vsyncadd [#allocation6], %s44
      %s46 = sshll.u32 [#allocation7], 4
      %s47 = int_to_ptr.vmem [resolvable:$true] %s46
      %52 = dma.hbm_to_vmem [thread:$0]  %s3, 4096, %s47, [#allocation6], 128, 128, 8
    $region17: #{tpu_custom_call.1} parent=1 // pred_fallthru
      _
    // Predicated region
    $region18: #{tpu_custom_call.1} parent=1 // pred_check
      _
    $region19: #{tpu_custom_call.1} parent=1 // pred_check_branch
      %54 = sbr.rel (0) target = $region21
    $region20: #{tpu_custom_call.1} parent=1 // pred_region
      _
    $region21: #{tpu_custom_call.1} parent=1 // pred_fallthru
      _
    // Predicated region
    $region22: #{tpu_custom_call.1} parent=1 // pred_check
      _
    $region23: #{tpu_custom_call.1} parent=1 // pred_check_branch
      %56 = sbr.rel (0) target = $region25
    $region24: #{tpu_custom_call.1} parent=1 // pred_region
      _
    $region25: #{tpu_custom_call.1} parent=1 // pred_fallthru
      _
    // Predicated region
    $region26: #{tpu_custom_call.1} parent=1 // pred_check
      _
    $region27: #{tpu_custom_call.1} parent=1 // pred_check_branch
      %58 = sbr.rel (0) target = $region29
    $region28: #{tpu_custom_call.1} parent=1 // pred_region
      _
    $region29: #{tpu_custom_call.1} parent=1 // pred_fallthru
      _
    // Predicated region
    $region30: #{tpu_custom_call.1} parent=1 // pred_check
      _
    $region31: #{tpu_custom_call.1} parent=1 // pred_check_branch
      %60 = sbr.rel (0) target = $region33
    $region32: #{tpu_custom_call.1} parent=1 // pred_region
      %61 = dma.done [#allocation3], 512
    $region33: #{tpu_custom_call.1} parent=1 // pred_fallthru
      _
    // Predicated region
    $region34: #{tpu_custom_call.1} parent=1 // pred_check
      _
    $region35: #{tpu_custom_call.1} parent=1 // pred_check_branch
      %63 = sbr.rel (0) target = $region37
    $region36: #{tpu_custom_call.1} parent=1 // pred_region
      %64 = dma.done [#allocation6], 8192
    $region37: #{tpu_custom_call.1} parent=1 // pred_fallthru
      _
    // Predicated region
    $region38: #{tpu_custom_call.1} parent=1 // pred_check
      _
    $region39: #{tpu_custom_call.1} parent=1 // pred_check_branch
      %66 = sbr.rel (0) target = $region41
    $region40: #{tpu_custom_call.1} parent=1 // pred_region
      %67 = dma.done [#allocation6], 4096
    $region41: #{tpu_custom_call.1} parent=1 // pred_fallthru
      _
    %v68 = vld [vmem:[#allocation5] sm:$0xff]
    %v69 = vld [vmem:[#allocation5 + $0x8] sm:$0xff]
    %v70 = vld [vmem:[#allocation5 + $0x10] sm:$0xff]
    %v71 = vld [vmem:[#allocation5 + $0x18] sm:$0xff]
    %v72 = vld [vmem:[#allocation5 + $0x20] sm:$0xff]
    %v73 = vld [vmem:[#allocation5 + $0x28] sm:$0xff]
    %v74 = vld [vmem:[#allocation5 + $0x30] sm:$0xff]
    %v75 = vld [vmem:[#allocation5 + $0x38] sm:$0xff]
    %v76 = vld [vmem:[#allocation5 + $0x40] sm:$0xff]
    %v77 = vld [vmem:[#allocation5 + $0x48] sm:$0xff]
    %v78 = vld [vmem:[#allocation5 + $0x50] sm:$0xff]
    %v79 = vld [vmem:[#allocation5 + $0x58] sm:$0xff]
    %v80 = vld [vmem:[#allocation5 + $0x60] sm:$0xff]
    %v81 = vld [vmem:[#allocation5 + $0x68] sm:$0xff]
    %v82 = vld [vmem:[#allocation5 + $0x70] sm:$0xff]
    %v83 = vld [vmem:[#allocation5 + $0x78] sm:$0xff]
    %v84 = vld [vmem:[#allocation5 + $0x80] sm:$0xff]
    %v85 = vld [vmem:[#allocation5 + $0x88] sm:$0xff]
    %v86 = vld [vmem:[#allocation5 + $0x90] sm:$0xff]
    %v87 = vld [vmem:[#allocation5 + $0x98] sm:$0xff]
    %v88 = vld [vmem:[#allocation5 + $0xa0] sm:$0xff]
    %v89 = vld [vmem:[#allocation5 + $0xa8] sm:$0xff]
    %v90 = vld [vmem:[#allocation5 + $0xb0] sm:$0xff]
    %v91 = vld [vmem:[#allocation5 + $0xb8] sm:$0xff]
    %v92 = vld [vmem:[#allocation5 + $0xc0] sm:$0xff]
    %v93 = vld [vmem:[#allocation5 + $0xc8] sm:$0xff]
    %v94 = vld [vmem:[#allocation5 + $0xd0] sm:$0xff]
    %v95 = vld [vmem:[#allocation5 + $0xd8] sm:$0xff]
    %v96 = vld [vmem:[#allocation5 + $0xe0] sm:$0xff]
    %v97 = vld [vmem:[#allocation5 + $0xe8] sm:$0xff]
    %v98 = vld [vmem:[#allocation5 + $0xf0] sm:$0xff]
    %v99 = vld [vmem:[#allocation5 + $0xf8] sm:$0xff]
    %v100 = vld [vmem:[#allocation5 + $0x100] sm:$0xff]
    %v101 = vld [vmem:[#allocation5 + $0x108] sm:$0xff]
    %v102 = vld [vmem:[#allocation5 + $0x110] sm:$0xff]
    %v103 = vld [vmem:[#allocation5 + $0x118] sm:$0xff]
    %v104 = vld [vmem:[#allocation5 + $0x120] sm:$0xff]
    %v105 = vld [vmem:[#allocation5 + $0x128] sm:$0xff]
    %v106 = vld [vmem:[#allocation5 + $0x130] sm:$0xff]
    %v107 = vld [vmem:[#allocation5 + $0x138] sm:$0xff]
    %v108 = vld [vmem:[#allocation5 + $0x140] sm:$0xff]
    %v109 = vld [vmem:[#allocation5 + $0x148] sm:$0xff]
    %v110 = vld [vmem:[#allocation5 + $0x150] sm:$0xff]
    %v111 = vld [vmem:[#allocation5 + $0x158] sm:$0xff]
    %v112 = vld [vmem:[#allocation5 + $0x160] sm:$0xff]
    %v113 = vld [vmem:[#allocation5 + $0x168] sm:$0xff]
    %v114 = vld [vmem:[#allocation5 + $0x170] sm:$0xff]
    %v115 = vld [vmem:[#allocation5 + $0x178] sm:$0xff]
    %v116 = vld [vmem:[#allocation5 + $0x180] sm:$0xff]
    %v117 = vld [vmem:[#allocation5 + $0x188] sm:$0xff]
    %v118 = vld [vmem:[#allocation5 + $0x190] sm:$0xff]
    %v119 = vld [vmem:[#allocation5 + $0x198] sm:$0xff]
    %v120 = vld [vmem:[#allocation5 + $0x1a0] sm:$0xff]
    %v121 = vld [vmem:[#allocation5 + $0x1a8] sm:$0xff]
    %v122 = vld [vmem:[#allocation5 + $0x1b0] sm:$0xff]
    %v123 = vld [vmem:[#allocation5 + $0x1b8] sm:$0xff]
    %v124 = vld [vmem:[#allocation5 + $0x1c0] sm:$0xff]
    %v125 = vld [vmem:[#allocation5 + $0x1c8] sm:$0xff]
    %v126 = vld [vmem:[#allocation5 + $0x1d0] sm:$0xff]
    %v127 = vld [vmem:[#allocation5 + $0x1d8] sm:$0xff]
    %v128 = vld [vmem:[#allocation5 + $0x1e0] sm:$0xff]
    %v129 = vld [vmem:[#allocation5 + $0x1e8] sm:$0xff]
    %v130 = vld [vmem:[#allocation5 + $0x1f0] sm:$0xff]
    %v131 = vld [vmem:[#allocation5 + $0x1f8] sm:$0xff]
    %v132 = vld [vmem:[#allocation7] sm:$0xff]
    %v133 = vld [vmem:[#allocation7 + $0x8] sm:$0xff]
    %v134 = vld [vmem:[#allocation7 + $0x10] sm:$0xff]
    %v135 = vld [vmem:[#allocation7 + $0x18] sm:$0xff]
    %v136 = vld [vmem:[#allocation7 + $0x20] sm:$0xff]
    %v137 = vld [vmem:[#allocation7 + $0x28] sm:$0xff]
    %v138 = vld [vmem:[#allocation7 + $0x30] sm:$0xff]
    %v139 = vld [vmem:[#allocation7 + $0x38] sm:$0xff]
    %v140 = vld [vmem:[#allocation7 + $0x40] sm:$0xff]
    %v141 = vld [vmem:[#allocation7 + $0x48] sm:$0xff]
    %v142 = vld [vmem:[#allocation7 + $0x50] sm:$0xff]
    %v143 = vld [vmem:[#allocation7 + $0x58] sm:$0xff]
    %v144 = vld [vmem:[#allocation7 + $0x60] sm:$0xff]
    %v145 = vld [vmem:[#allocation7 + $0x68] sm:$0xff]
    %v146 = vld [vmem:[#allocation7 + $0x70] sm:$0xff]
    %v147 = vld [vmem:[#allocation7 + $0x78] sm:$0xff]
    %v148 = vld [vmem:[#allocation7 + $0x80] sm:$0xff]
    %v149 = vld [vmem:[#allocation7 + $0x88] sm:$0xff]
    %v150 = vld [vmem:[#allocation7 + $0x90] sm:$0xff]
    %v151 = vld [vmem:[#allocation7 + $0x98] sm:$0xff]
    %v152 = vld [vmem:[#allocation7 + $0xa0] sm:$0xff]
    %v153 = vld [vmem:[#allocation7 + $0xa8] sm:$0xff]
    %v154 = vld [vmem:[#allocation7 + $0xb0] sm:$0xff]
    %v155 = vld [vmem:[#allocation7 + $0xb8] sm:$0xff]
    %v156 = vld [vmem:[#allocation7 + $0xc0] sm:$0xff]
    %v157 = vld [vmem:[#allocation7 + $0xc8] sm:$0xff]
    %v158 = vld [vmem:[#allocation7 + $0xd0] sm:$0xff]
    %v159 = vld [vmem:[#allocation7 + $0xd8] sm:$0xff]
    %v160 = vld [vmem:[#allocation7 + $0xe0] sm:$0xff]
    %v161 = vld [vmem:[#allocation7 + $0xe8] sm:$0xff]
    %v162 = vld [vmem:[#allocation7 + $0xf0] sm:$0xff]
    %v163 = vld [vmem:[#allocation7 + $0xf8] sm:$0xff]
    %v164 = vld [vmem:[#allocation2] sm:$0xff]
    %v165 = vld [vmem:[#allocation2 + $0x8] sm:$0xff]
    %v166 = vld [vmem:[#allocation2 + $0x10] sm:$0xff]
    %v167 = vld [vmem:[#allocation2 + $0x18] sm:$0xff]
    %v168 = vld [vmem:[%s2] sm:$0x3]
    %v170 = vlaneseq
    %v171 = vshrl.u32 %v170, 7
    %v172 = vsub.s32 0, %v171
    %v173 = vrot.slane %v168, %v172
    %v174 = vlaneseq
    %v175 = vshrl.u32 %v174, 7
    %v176 = vsub.s32 1, %v175
    %v177 = vrot.slane %v168, %v176
    %180 = vmatprep.subr.mxu0 %v69
    %181 = vmatpush1.msra.mxu0 %v68
    %182 = vmatprep.subr.mxu0 %v71
    %183 = vmatpush1.msra.mxu0 %v70
    %184 = vmatprep.subr.mxu0 %v73
    %185 = vmatpush1.msra.mxu0 %v72
    %186 = vmatprep.subr.mxu0 %v75
    %187 = vmatpush1.msra.mxu0 %v74
    %188 = vmatprep.subr.mxu0 %v77
    %189 = vmatpush1.msra.mxu0 %v76
    %190 = vmatprep.subr.mxu0 %v79
    %191 = vmatpush1.msra.mxu0 %v78
    %192 = vmatprep.subr.mxu0 %v81
    %193 = vmatpush1.msra.mxu0 %v80
    %194 = vmatprep.subr.mxu0 %v83
    %195 = vmatpush1.msra.mxu0 %v82
    %196 = vmatprep.subr.mxu0 %v85
    %197 = vmatpush1.msra.mxu0 %v84
    %198 = vmatprep.subr.mxu0 %v87
    %199 = vmatpush1.msra.mxu0 %v86
    %200 = vmatprep.subr.mxu0 %v89
    %201 = vmatpush1.msra.mxu0 %v88
    %202 = vmatprep.subr.mxu0 %v91
    %203 = vmatpush1.msra.mxu0 %v90
    %204 = vmatprep.subr.mxu0 %v93
    %205 = vmatpush1.msra.mxu0 %v92
    %206 = vmatprep.subr.mxu0 %v95
    %207 = vmatpush1.msra.mxu0 %v94
    %208 = vmatprep.subr.mxu0 %v97
    %209 = vmatpush1.msra.mxu0 %v96
    %210 = vmatprep.subr.mxu0 %v99
    %211 = vmatpush1.msra.mxu0 %v98
    %212 = vmatprep.subr.mxu0 %v101
    %213 = vmatpush1.msra.mxu0 %v100
    %214 = vmatprep.subr.mxu0 %v103
    %215 = vmatpush1.msra.mxu0 %v102
    %216 = vmatprep.subr.mxu0 %v105
    %217 = vmatpush1.msra.mxu0 %v104
    %218 = vmatprep.subr.mxu0 %v107
    %219 = vmatpush1.msra.mxu0 %v106
    %220 = vmatprep.subr.mxu0 %v109
    %221 = vmatpush1.msra.mxu0 %v108
    %222 = vmatprep.subr.mxu0 %v111
    %223 = vmatpush1.msra.mxu0 %v110
    %224 = vmatprep.subr.mxu0 %v113
    %225 = vmatpush1.msra.mxu0 %v112
    %226 = vmatprep.subr.mxu0 %v115
    %227 = vmatpush1.msra.mxu0 %v114
    %228 = vmatprep.subr.mxu0 %v117
    %229 = vmatpush1.msra.mxu0 %v116
    %230 = vmatprep.subr.mxu0 %v119
    %231 = vmatpush1.msra.mxu0 %v118
    %232 = vmatprep.subr.mxu0 %v121
    %233 = vmatpush1.msra.mxu0 %v120
    %234 = vmatprep.subr.mxu0 %v123
    %235 = vmatpush1.msra.mxu0 %v122
    %236 = vmatprep.subr.mxu0 %v125
    %237 = vmatpush1.msra.mxu0 %v124
    %238 = vmatprep.subr.mxu0 %v127
    %239 = vmatpush1.msra.mxu0 %v126
    %240 = vmatprep.subr.mxu0 %v129
    %241 = vmatpush1.msra.mxu0 %v128
    %242 = vmatprep.subr.mxu0 %v131
    %243 = vmatpush1.msra.mxu0 %v130
    %244 = vmatprep.mubr.f32.mxu0 %v165
    %245 = vmatmul.mubr.f32.gmra.mrb[0].mxu0 %v164
    %v246 = vpop.f32.mrb[0].mxu0
    %v247 = vadd.f32 %v173, %v246
    %v248 = vpop.f32.mrb[0].mxu0
    %v249 = vadd.f32 %v177, %v248
    %250 = vmatprep.mubr.f32.mxu0 %v167
    %251 = vmatmul.mubr.f32.gmra.mrb[0].mxu0 %v166
    %v252 = vpop.f32.mrb[0].mxu0
    %v253 = vadd.f32 %v173, %v252
    %v254 = vpop.f32.mrb[0].mxu0
    %v255 = vadd.f32 %v177, %v254
    %256 = vdwg.mxu0
    %v257 = vmul.f32 %v247, 0.5
    %v258 = vmul.f32 %v249, 0.5
    %v259 = vmul.f32 %v253, 0.5
    %v260 = vmul.f32 %v255, 0.5
    %v261 = vmul.f32 %v247, 0.70710677
    %v262 = vmul.f32 %v249, 0.70710677
    %v263 = vmul.f32 %v253, 0.70710677
    %v264 = vmul.f32 %v255, 0.70710677
    %v265 = verf.f32.pop %v261
    %v266 = verf.f32.pop %v262
    %v267 = verf.f32.pop %v263
    %v268 = verf.f32.pop %v264
    %v269 = vadd.f32 %v265, 1.0
    %v270 = vadd.f32 %v266, 1.0
    %v271 = vadd.f32 %v267, 1.0
    %v272 = vadd.f32 %v268, 1.0
    %v273 = vmul.f32 %v257, %v269
    %v274 = vmul.f32 %v258, %v270
    %v275 = vmul.f32 %v259, %v271
    %v276 = vmul.f32 %v260, %v272
    %v277 = vld [vmem:[%s4] sm:$0x1]
    %v279 = vlaneseq
    %v280 = vshrl.u32 %v279, 7
    %v281 = vsub.s32 0, %v280
    %v282 = vrot.slane %v277, %v281
    %284 = vmatprep.subr.mxu0 0.0
    %285 = vmatpush1.msra.mxu0 %v132
    %286 = vmatprep.subr.mxu0 0.0
    %287 = vmatpush1.msra.mxu0 %v133
    %288 = vmatprep.subr.mxu0 0.0
    %289 = vmatpush1.msra.mxu0 %v134
    %290 = vmatprep.subr.mxu0 0.0
    %291 = vmatpush1.msra.mxu0 %v135
    %292 = vmatprep.subr.mxu0 0.0
    %293 = vmatpush1.msra.mxu0 %v136
    %294 = vmatprep.subr.mxu0 0.0
    %295 = vmatpush1.msra.mxu0 %v137
    %296 = vmatprep.subr.mxu0 0.0
    %297 = vmatpush1.msra.mxu0 %v138
    %298 = vmatprep.subr.mxu0 0.0
    %299 = vmatpush1.msra.mxu0 %v139
    %300 = vmatprep.subr.mxu0 0.0
    %301 = vmatpush1.msra.mxu0 %v140
    %302 = vmatprep.subr.mxu0 0.0
    %303 = vmatpush1.msra.mxu0 %v141
    %304 = vmatprep.subr.mxu0 0.0
    %305 = vmatpush1.msra.mxu0 %v142
    %306 = vmatprep.subr.mxu0 0.0
    %307 = vmatpush1.msra.mxu0 %v143
    %308 = vmatprep.subr.mxu0 0.0
    %309 = vmatpush1.msra.mxu0 %v144
    %310 = vmatprep.subr.mxu0 0.0
    %311 = vmatpush1.msra.mxu0 %v145
    %312 = vmatprep.subr.mxu0 0.0
    %313 = vmatpush1.msra.mxu0 %v146
    %314 = vmatprep.subr.mxu0 0.0
    %315 = vmatpush1.msra.mxu0 %v147
    %316 = vmatprep.subr.mxu0 0.0
    %317 = vmatpush1.msra.mxu0 %v148
    %318 = vmatprep.subr.mxu0 0.0
    %319 = vmatpush1.msra.mxu0 %v149
    %320 = vmatprep.subr.mxu0 0.0
    %321 = vmatpush1.msra.mxu0 %v150
    %322 = vmatprep.subr.mxu0 0.0
    %323 = vmatpush1.msra.mxu0 %v151
    %324 = vmatprep.subr.mxu0 0.0
    %325 = vmatpush1.msra.mxu0 %v152
    %326 = vmatprep.subr.mxu0 0.0
    %327 = vmatpush1.msra.mxu0 %v153
    %328 = vmatprep.subr.mxu0 0.0
    %329 = vmatpush1.msra.mxu0 %v154
    %330 = vmatprep.subr.mxu0 0.0
    %331 = vmatpush1.msra.mxu0 %v155
    %332 = vmatprep.subr.mxu0 0.0
    %333 = vmatpush1.msra.mxu0 %v156
    %334 = vmatprep.subr.mxu0 0.0
    %335 = vmatpush1.msra.mxu0 %v157
    %336 = vmatprep.subr.mxu0 0.0
    %337 = vmatpush1.msra.mxu0 %v158
    %338 = vmatprep.subr.mxu0 0.0
    %339 = vmatpush1.msra.mxu0 %v159
    %340 = vmatprep.subr.mxu0 0.0
    %341 = vmatpush1.msra.mxu0 %v160
    %342 = vmatprep.subr.mxu0 0.0
    %343 = vmatpush1.msra.mxu0 %v161
    %344 = vmatprep.subr.mxu0 0.0
    %345 = vmatpush1.msra.mxu0 %v162
    %346 = vmatprep.subr.mxu0 0.0
    %347 = vmatpush1.msra.mxu0 %v163
    %348 = vmatprep.mubr.f32.mxu0 %v274
    %349 = vmatmul.mubr.f32.gmra.mrb[0].mxu0 %v273
    %v350 = vpop.f32.mrb[0].mxu0
    %v351 = vadd.f32 %v282, %v350
    %v352 = vpop.f32.mrb[0].mxu0
    %353 = vmatprep.mubr.f32.mxu0 %v276
    %354 = vmatmul.mubr.f32.gmra.mrb[0].mxu0 %v275
    %v355 = vpop.f32.mrb[0].mxu0
    %v356 = vadd.f32 %v282, %v355
    %v357 = vpop.f32.mrb[0].mxu0
    %358 = vdwg.mxu0
    %359 = vadd.xlane.f32.xlu0 %v351
    %v360 = vpop.xlane.xlu0 %359
    %361 = vadd.xlane.f32.xlu0 %v356
    %v362 = vpop.xlane.xlu0 %361
    %v363 = vrcp.pop 128.0
    %v364 = vmul.f32 %v360, %v363
    %v365 = vmul.f32 %v362, %v363
    %v366 = vsub.f32 %v351, %v364
    %v367 = vsub.f32 %v356, %v365
    %v368 = vmul.f32 %v366, %v366
    %v369 = vmul.f32 %v367, %v367
    %370 = vadd.xlane.f32.xlu0 %v368
    %v371 = vpop.xlane.xlu0 %370
    %372 = vadd.xlane.f32.xlu0 %v369
    %v373 = vpop.xlane.xlu0 %372
    %v374 = vmul.f32 %v371, %v363
    %v375 = vmul.f32 %v373, %v363
    %v376 = vadd.f32 %v374, 1e-05
    %v377 = vadd.f32 %v375, 1e-05
    %v378 = vrsqrt.pop %v376
    %v379 = vrsqrt.pop %v377
    %v380 = vmul.f32 %v366, %v378
    %v381 = vmul.f32 %v367, %v379
    %v382 = vld [vmem:[%s5] sm:$0x1]
    %v384 = vlaneseq
    %v385 = vshrl.u32 %v384, 7
    %v386 = vsub.s32 0, %v385
    %v387 = vrot.slane %v382, %v386
    %v389 = vmul.f32 %v380, %v387
    %v390 = vmul.f32 %v381, %v387
    %v391 = vld [vmem:[%s6] sm:$0x1]
    %v393 = vlaneseq
    %v394 = vshrl.u32 %v393, 7
    %v395 = vsub.s32 0, %v394
    %v396 = vrot.slane %v391, %v395
    %v398 = vadd.f32 %v389, %v396
    %v399 = vadd.f32 %v390, %v396
    %400 = vst [vmem:[#allocation8] sm:$0xff] %v398
    %401 = vst [vmem:[#allocation8 + $0x8] sm:$0xff] %v399
    // Predicated region
    $region42: #{tpu_custom_call.1} parent=1 // pred_check
      _
    $region43: #{tpu_custom_call.1} parent=1 // pred_check_branch
      %403 = sbr.rel (0) target = $region45
    $region44: #{tpu_custom_call.1} parent=1 // pred_region
      %s405 = ssub.s32 256, 256
      %406 = vsyncadd [#allocation4], %s405
      %s407 = sshll.u32 [#allocation8], 4
      %s408 = int_to_ptr.vmem [resolvable:$true] %s407
      %413 = dma.vmem_to_hbm [thread:$0]  %s408, 256, %s7, [#allocation4], 128, 128, 8
    $region45: #{tpu_custom_call.1} parent=1 // pred_fallthru
      _
    // Predicated region
    $region46: #{tpu_custom_call.1} parent=1 // pred_check
      _
    $region47: #{tpu_custom_call.1} parent=1 // pred_check_branch
      %415 = sbr.rel (0) target = $region49
    $region48: #{tpu_custom_call.1} parent=1 // pred_region
      %416 = dma.done [#allocation4], 256
    $region49: #{tpu_custom_call.1} parent=1 // pred_fallthru
      _
    %417 = vsyncpa [#allocation3], 1
    %418 = vsyncpa [#allocation6], 1
    %419 = vsyncpa [#allocation4], 1

</llo_original>
